<compile_context>
chip_gen: v6e
topology: v6e:2x2x1
jax: 0.10.0
libtpu: 0.0.40
codegen_flags: <defaults>
</compile_context>

<pallas_src>
import functools
import math

import jax
import jax.numpy as jnp
from jax.experimental import pallas as pl
from jax.experimental.pallas import tpu as pltpu


def _round_up(x, m):
    return -(-x // m) * m


def _tile_and_pad(dim, tile, align):
    """Pick an effective tile and padded dim.

    If the dim fits in one tile, use the full dim as the block (exempt from
    the (8,128) divisibility rule). Otherwise use an aligned tile and pad the
    dim up to a multiple of it.
    """
    if dim <= tile:
        return dim, dim
    tile = _round_up(tile, align)
    return tile, _round_up(dim, tile)


def _lora_linear_kernel(x_ref, wT_ref, bias_ref, a_ref, b_ref, o_ref,
                        acc_ref, xa_ref, *, scaling):
    # x_ref:    (tm, tk)
    # wT_ref:   (tk, tn)     -- W pre-transposed
    # bias_ref: (1,  tn)
    # a_ref:    (tk, rank)
    # b_ref:    (rank, tn)
    # o_ref:    (tm, tn)
    # acc_ref:  (tm, tn) f32  VMEM accumulator for the base matmul
    # xa_ref:   (tm, rank) f32 VMEM accumulator for x @ A
    k = pl.program_id(2)

    @pl.when(k == 0)
    def _init():
        acc_ref[...] = jnp.zeros_like(acc_ref)
        xa_ref[...] = jnp.zeros_like(xa_ref)

    x = x_ref[...]
    # Base path: accumulate x @ W^T over the K grid axis (f32 accumulation).
    acc_ref[...] += jnp.dot(x, wT_ref[...], preferred_element_type=jnp.float32)
    # LoRA down-projection: accumulate x @ A (tiny, rank columns).
    xa_ref[...] += jnp.dot(x, a_ref[...], preferred_element_type=jnp.float32)

    @pl.when(k == pl.num_programs(2) - 1)
    def _finalize():
        # Scale the small (tm, rank) intermediate instead of the (tm, tn) tile.
        xa = xa_ref[...] * scaling
        lora = jnp.dot(xa, b_ref[...].astype(jnp.float32),
                       preferred_element_type=jnp.float32)
        out = acc_ref[...] + bias_ref[...].astype(jnp.float32) + lora
        o_ref[...] = out.astype(o_ref.dtype)


def lora_linear(x, weight_t, bias, lora_A, lora_B, *, alpha=32, rank=8,
                tm=256, tn=256, tk=512, compute_dtype=None):
    """LoRA linear forward.

    x:        (..., in_features)
    weight_t: (in_features, out_features)  -- nn.Linear weight pre-transposed
              ONCE at parameter setup (do not call .T per forward).
    bias:     (out_features,)
    lora_A:   (in_features, rank)
    lora_B:   (rank, out_features)
    compute_dtype: optionally cast matmul operands (e.g. jnp.bfloat16) while
              keeping f32 accumulation; output keeps x.dtype.
    """
    scaling = alpha / rank
    out_dtype = x.dtype
    *lead, in_f = x.shape
    in_f_w, out_f = weight_t.shape
    assert in_f == in_f_w
    assert lora_A.shape == (in_f, rank)
    assert lora_B.shape == (rank, out_f)
    assert bias.shape == (out_f,)

    M = 1
    for d in lead:
        M *= d
    x2d = x.reshape(M, in_f)
    bias2d = bias.reshape(1, out_f)

    if compute_dtype is not None:
        x2d = x2d.astype(compute_dtype)
        weight_t = weight_t.astype(compute_dtype)
        lora_A = lora_A.astype(compute_dtype)
        lora_B = lora_B.astype(compute_dtype)

    # Effective tiles + zero-padding for ragged shapes.
    tm_e, M_p = _tile_and_pad(M, tm, 8)
    tn_e, N_p = _tile_and_pad(out_f, tn, 128)
    tk_e, K_p = _tile_and_pad(in_f, tk, 128)

    if M_p != M or K_p != in_f:
        x2d = jnp.pad(x2d, ((0, M_p - M), (0, K_p - in_f)))
    if K_p != in_f or N_p != out_f:
        weight_t = jnp.pad(weight_t, ((0, K_p - in_f), (0, N_p - out_f)))
    if K_p != in_f:
        lora_A = jnp.pad(lora_A, ((0, K_p - in_f), (0, 0)))
    if N_p != out_f:
        lora_B = jnp.pad(lora_B, ((0, 0), (0, N_p - out_f)))
        bias2d = jnp.pad(bias2d, ((0, 0), (0, N_p - out_f)))

    grid = (M_p // tm_e, N_p // tn_e, K_p // tk_e)
    kernel = functools.partial(_lora_linear_kernel, scaling=scaling)

    out2d = pl.pallas_call(
        kernel,
        out_shape=jax.ShapeDtypeStruct((M_p, N_p), out_dtype),
        grid_spec=pltpu.PrefetchScalarGridSpec(
            num_scalar_prefetch=0,
            grid=grid,
            in_specs=[
                pl.BlockSpec((tm_e, tk_e), lambda i, j, k: (i, k)),   # x tile
                pl.BlockSpec((tk_e, tn_e), lambda i, j, k: (k, j)),   # W^T tile
                pl.BlockSpec((1, tn_e), lambda i, j, k: (0, j)),      # bias
                pl.BlockSpec((tk_e, rank), lambda i, j, k: (k, 0)),   # lora_A
                pl.BlockSpec((rank, tn_e), lambda i, j, k: (0, j)),   # lora_B
            ],
            out_specs=pl.BlockSpec((tm_e, tn_e), lambda i, j, k: (i, j)),
            scratch_shapes=[
                pltpu.VMEM((tm_e, tn_e), jnp.float32),   # base accumulator
                pltpu.VMEM((tm_e, rank), jnp.float32),   # x @ A accumulator
            ],
        ),
        compiler_params=pltpu.CompilerParams(
            dimension_semantics=("parallel", "parallel", "arbitrary")),
    )(x2d, weight_t, bias2d, lora_A, lora_B)

    return out2d[:M, :out_f].reshape(*lead, out_f)


def lora_linear_ref(x, weight, bias, lora_A, lora_B, *, alpha=32, rank=8):
    scaling = alpha / rank
    base = jnp.einsum("bsi,oi->bso", x, weight) + bias
    lora = (x @ lora_A) @ lora_B * scaling
    return base + lora


if __name__ == "__main__":
    batch, seq = 2, 8
    in_features, out_features, rank, alpha = 32, 32, 8, 32

    key = jax.random.PRNGKey(0)
    kx, kw, kb, ka, kbb = jax.random.split(key, 5)

    x = jax.random.normal(kx, (batch, seq, in_features), dtype=jnp.float32)

    bound = 1.0 / math.sqrt(in_features)
    weight = jax.random.uniform(kw, (out_features, in_features),
                                minval=-bound, maxval=bound, dtype=jnp.float32)
    bias = jax.random.uniform(kb, (out_features,),
                              minval=-bound, maxval=bound, dtype=jnp.float32)
    lora_A = jax.random.uniform(ka, (in_features, rank),
                                minval=-bound, maxval=bound, dtype=jnp.float32)
    # NOTE: the module inits lora_B to zeros; use small random values so the
    # LoRA path is numerically exercised (forward semantics unchanged).
    lora_B = 0.01 * jax.random.normal(kbb, (rank, out_features), dtype=jnp.float32)

    # Pre-transpose the Linear weight ONCE at setup (not per forward call).
    weight_t = jnp.asarray(weight.T)

    # --- test 1: small single-tile f32 path -------------------------------
    out = lora_linear(x, weight_t, bias, lora_A, lora_B, alpha=alpha, rank=rank)
    out = jax.block_until_ready(out)
    ref = lora_linear_ref(x, weight, bias, lora_A, lora_B, alpha=alpha, rank=rank)
    assert out.shape == (batch, seq, out_features)
    assert jnp.allclose(out, ref, atol=1e-4, rtol=1e-4), "mismatch vs reference"

    # --- test 2: exercise the (M, N, K) tiling + accumulator path ---------
    in2, out2 = 256, 256
    k2 = jax.random.split(jax.random.PRNGKey(1), 5)
    b2w = 1.0 / math.sqrt(in2)
    x2 = jax.random.normal(k2[0], (batch, seq, in2), dtype=jnp.float32)
    w2 = jax.random.uniform(k2[1], (out2, in2), minval=-b2w, maxval=b2w,
                            dtype=jnp.float32)
    bias2 = jax.random.uniform(k2[2], (out2,), minval=-b2w, maxval=b2w,
                               dtype=jnp.float32)
    A2 = jax.random.uniform(k2[3], (in2, rank), minval=-b2w, maxval=b2w,
                            dtype=jnp.float32)
    B2 = 0.01 * jax.random.normal(k2[4], (rank, out2), dtype=jnp.float32)
    w2_t = jnp.asarray(w2.T)

    out_tiled = lora_linear(x2, w2_t, bias2, A2, B2, alpha=alpha, rank=rank,
                            tm=8, tn=128, tk=128)   # grid (2, 2, 2)
    out_tiled = jax.block_until_ready(out_tiled)
    ref2 = lora_linear_ref(x2, w2, bias2, A2, B2, alpha=alpha, rank=rank)
    assert jnp.allclose(out_tiled, ref2, atol=1e-2, rtol=1e-2), "tiled mismatch"

    # --- test 3: bf16 MXU operands, f32 accumulation (loose tolerance) ----
    out_bf16 = lora_linear(x, weight_t, bias, lora_A, lora_B, alpha=alpha,
                           rank=rank, compute_dtype=jnp.bfloat16)
    out_bf16 = jax.block_until_ready(out_bf16)
    assert jnp.allclose(out_bf16, ref, atol=5e-2, rtol=5e-2), "bf16 mismatch"

    print("KERNEL_OK")
</pallas_src>

<mosaic_0001>
module attributes {stable_mosaic.version = 11 : i64} {
  func.func @_lora_linear_kernel(%arg0: i32, %arg1: i32, %arg2: i32, %arg3: memref<16x32xf32, #tpu.memory_space<vmem>>, %arg4: memref<32x32xf32, #tpu.memory_space<vmem>>, %arg5: memref<1x32xf32, #tpu.memory_space<vmem>>, %arg6: memref<32x8xf32, #tpu.memory_space<vmem>>, %arg7: memref<8x32xf32, #tpu.memory_space<vmem>>, %arg8: memref<16x32xf32, #tpu.memory_space<vmem>>, %arg9: memref<16x32xf32, #tpu.memory_space<vmem>>, %arg10: memref<16x8xf32, #tpu.memory_space<vmem>>) attributes {dimension_semantics = [#tpu.dimension_semantics<parallel>, #tpu.dimension_semantics<parallel>, #tpu.dimension_semantics<arbitrary>], iteration_bounds = array<i64: 1, 1, 1>, scalar_prefetch = 0 : i64, scratch_operands = 2 : i64, tpu.core_type = #tpu.core_type<tc>, window_params = [{transform_indices = @transform_0, window_bounds = array<i64: 16, 32>}, {transform_indices = @transform_1, window_bounds = array<i64: 32, 32>}, {transform_indices = @transform_2, window_bounds = array<i64: 1, 32>}, {transform_indices = @transform_3, window_bounds = array<i64: 32, 8>}, {transform_indices = @transform_4, window_bounds = array<i64: 8, 32>}, {transform_indices = @transform_5, window_bounds = array<i64: 16, 32>}]} {
    %c0_i32 = arith.constant 0 : i32
    %0 = arith.cmpi eq, %arg2, %c0_i32 : i32
    %1 = arith.extui %0 : i1 to i32
    %c0_i32_0 = arith.constant 0 : i32
    %2 = arith.cmpi ne, %1, %c0_i32_0 : i32
    scf.if %2 {
      %cst_17 = arith.constant 0.000000e+00 : f32
      %17 = vector.broadcast %cst_17 : f32 to vector<16x32xf32>
      %c0_18 = arith.constant 0 : index
      %c0_19 = arith.constant 0 : index
      %18 = vector.load %arg9[%c0_18, %c0_19] : memref<16x32xf32, #tpu.memory_space<vmem>>, vector<16x32xf32>
      tpu.vector_store %arg9[%c0_18, %c0_19], %17 {strides = array<i32>} : memref<16x32xf32, #tpu.memory_space<vmem>>, vector<16x32xf32>,
      %cst_20 = arith.constant 0.000000e+00 : f32
      %19 = vector.broadcast %cst_20 : f32 to vector<16x8xf32>
      %c0_21 = arith.constant 0 : index
      %c0_22 = arith.constant 0 : index
      %20 = vector.load %arg10[%c0_21, %c0_22] : memref<16x8xf32, #tpu.memory_space<vmem>>, vector<16x8xf32>
      tpu.vector_store %arg10[%c0_21, %c0_22], %19 {strides = array<i32>} : memref<16x8xf32, #tpu.memory_space<vmem>>, vector<16x8xf32>,
    } else {
    }
    %c0 = arith.constant 0 : index
    %c0_1 = arith.constant 0 : index
    %3 = vector.load %arg3[%c0, %c0_1] : memref<16x32xf32, #tpu.memory_space<vmem>>, vector<16x32xf32>
    %c0_2 = arith.constant 0 : index
    %c0_3 = arith.constant 0 : index
    %4 = vector.load %arg9[%c0_2, %c0_3] : memref<16x32xf32, #tpu.memory_space<vmem>>, vector<16x32xf32>
    %c0_4 = arith.constant 0 : index
    %c0_5 = arith.constant 0 : index
    %5 = vector.load %arg4[%c0_4, %c0_5] : memref<32x32xf32, #tpu.memory_space<vmem>>, vector<32x32xf32>
    %cst = arith.constant dense<0.000000e+00> : vector<16x32xf32>
    %6 = tpu.matmul %3, %5, %cst {dimension_numbers = #tpu.dot_dimension_numbers<[1], [0], [0], [1], [0, 0, 1, 1], [], []>} : vector<16x32xf32>, vector<32x32xf32>, vector<16x32xf32> -> vector<16x32xf32>
    %7 = arith.addf %4, %6 : vector<16x32xf32>
    %c0_6 = arith.constant 0 : index
    %c0_7 = arith.constant 0 : index
    %8 = vector.load %arg9[%c0_6, %c0_7] : memref<16x32xf32, #tpu.memory_space<vmem>>, vector<16x32xf32>
    tpu.vector_store %arg9[%c0_6, %c0_7], %7 {strides = array<i32>} : memref<16x32xf32, #tpu.memory_space<vmem>>, vector<16x32xf32>,
    %c0_8 = arith.constant 0 : index
    %c0_9 = arith.constant 0 : index
    %9 = vector.load %arg10[%c0_8, %c0_9] : memref<16x8xf32, #tpu.memory_space<vmem>>, vector<16x8xf32>
    %c0_10 = arith.constant 0 : index
    %c0_11 = arith.constant 0 : index
    %10 = vector.load %arg6[%c0_10, %c0_11] : memref<32x8xf32, #tpu.memory_space<vmem>>, vector<32x8xf32>
    %cst_12 = arith.constant dense<0.000000e+00> : vector<16x8xf32>
    %11 = tpu.matmul %3, %10, %cst_12 {dimension_numbers = #tpu.dot_dimension_numbers<[1], [0], [0], [1], [0, 0, 1, 1], [], []>} : vector<16x32xf32>, vector<32x8xf32>, vector<16x8xf32> -> vector<16x8xf32>
    %12 = arith.addf %9, %11 : vector<16x8xf32>
    %c0_13 = arith.constant 0 : index
    %c0_14 = arith.constant 0 : index
    %13 = vector.load %arg10[%c0_13, %c0_14] : memref<16x8xf32, #tpu.memory_space<vmem>>, vector<16x8xf32>
    tpu.vector_store %arg10[%c0_13, %c0_14], %12 {strides = array<i32>} : memref<16x8xf32, #tpu.memory_space<vmem>>, vector<16x8xf32>,
    %c0_i32_15 = arith.constant 0 : i32
    %14 = arith.cmpi eq, %arg2, %c0_i32_15 : i32
    %15 = arith.extui %14 : i1 to i32
    %c0_i32_16 = arith.constant 0 : i32
    %16 = arith.cmpi ne, %15, %c0_i32_16 : i32
    scf.if %16 {
      %c0_17 = arith.constant 0 : index
      %c0_18 = arith.constant 0 : index
      %17 = vector.load %arg10[%c0_17, %c0_18] : memref<16x8xf32, #tpu.memory_space<vmem>>, vector<16x8xf32>
      %cst_19 = arith.constant 4.000000e+00 : f32
      %18 = vector.broadcast %cst_19 : f32 to vector<16x8xf32>
      %19 = arith.mulf %17, %18 : vector<16x8xf32>
      %c0_20 = arith.constant 0 : index
      %c0_21 = arith.constant 0 : index
      %20 = vector.load %arg7[%c0_20, %c0_21] : memref<8x32xf32, #tpu.memory_space<vmem>>, vector<8x32xf32>
      %cst_22 = arith.constant dense<0.000000e+00> : vector<16x32xf32>
      %21 = tpu.matmul %19, %20, %cst_22 {dimension_numbers = #tpu.dot_dimension_numbers<[1], [0], [0], [1], [0, 0, 1, 1], [], []>} : vector<16x8xf32>, vector<8x32xf32>, vector<16x32xf32> -> vector<16x32xf32>
      %c0_23 = arith.constant 0 : index
      %c0_24 = arith.constant 0 : index
      %22 = vector.load %arg9[%c0_23, %c0_24] : memref<16x32xf32, #tpu.memory_space<vmem>>, vector<16x32xf32>
      %c0_25 = arith.constant 0 : index
      %c0_26 = arith.constant 0 : index
      %23 = vector.load %arg5[%c0_25, %c0_26] : memref<1x32xf32, #tpu.memory_space<vmem>>, vector<1x32xf32>
      %24 = vector.broadcast %23 : vector<1x32xf32> to vector<16x32xf32>
      %25 = arith.addf %22, %24 : vector<16x32xf32>
      %26 = arith.addf %25, %21 : vector<16x32xf32>
      %c0_27 = arith.constant 0 : index
      %c0_28 = arith.constant 0 : index
      %27 = vector.load %arg8[%c0_27, %c0_28] : memref<16x32xf32, #tpu.memory_space<vmem>>, vector<16x32xf32>
      tpu.vector_store %arg8[%c0_27, %c0_28], %26 {strides = array<i32>} : memref<16x32xf32, #tpu.memory_space<vmem>>, vector<16x32xf32>,
    } else {
    }
    return
  }
  func.func @transform_0(%arg0: i32, %arg1: i32, %arg2: i32) -> (i32, i32) {
    %c0_i32 = arith.constant 0 : i32
    return %arg0, %arg2 : i32, i32
  }
  func.func @transform_1(%arg0: i32, %arg1: i32, %arg2: i32) -> (i32, i32) {
    %c0_i32 = arith.constant 0 : i32
    return %arg2, %arg1 : i32, i32
  }
  func.func @transform_2(%arg0: i32, %arg1: i32, %arg2: i32) -> (i32, i32) {
    %c0_i32 = arith.constant 0 : i32
    %c0_i32_0 = arith.constant 0 : i32
    return %c0_i32, %arg1 : i32, i32
  }
  func.func @transform_3(%arg0: i32, %arg1: i32, %arg2: i32) -> (i32, i32) {
    %c0_i32 = arith.constant 0 : i32
    %c0_i32_0 = arith.constant 0 : i32
    return %arg2, %c0_i32 : i32, i32
  }
  func.func @transform_4(%arg0: i32, %arg1: i32, %arg2: i32) -> (i32, i32) {
    %c0_i32 = arith.constant 0 : i32
    %c0_i32_0 = arith.constant 0 : i32
    return %c0_i32, %arg1 : i32, i32
  }
  func.func @transform_5(%arg0: i32, %arg1: i32, %arg2: i32) -> (i32, i32) {
    %c0_i32 = arith.constant 0 : i32
    return %arg0, %arg1 : i32, i32
  }
}

</mosaic_0001>

<llo_original>
// kernel: tpu_custom_call.1
$region0: #{tpu_custom_call.1}
  #allocation0 [shape = 'u32[]', space=smem, size = 0x4, offset = 0x4, fixed_abs, tag = 'smem constant byte address 0x4 - core index']
  #allocation1 [shape = 'u32[144,128]{1,0:T(1,128)}', space=vmem, size = 0x12000, scoped, tag = 'internal scratch']
  #allocation2 [shape = 'f32[16,32]{1,0:T(8,128)}', space=vmem, size = 0x2000, scoped, tag = 'scratch operand']
  #allocation3 [shape = 'f32[16,8]{1,0:T(8,128)}', space=vmem, size = 0x2000, scoped, tag = 'scratch operand']
  %s0 = inlined_call_operand.hbm [shape: f32[16,32], index: 0, kind: input, shape index: {}]
  %s1 = inlined_call_operand.vmem [shape: f32[32,32], index: 1, kind: input, shape index: {}]
  %s2 = inlined_call_operand.vmem [shape: f32[1,32], index: 2, kind: input, shape index: {}]
  %s3 = inlined_call_operand.vmem [shape: f32[32,8], index: 3, kind: input, shape index: {}]
  %s4 = inlined_call_operand.vmem [shape: f32[8,32], index: 4, kind: input, shape index: {}]
  %s5 = inlined_call_operand.hbm [shape: f32[16,32], index: 5, kind: output, shape index: {}]
  %s6 = sld [smem:[#allocation0]]
  $region42: #{tpu_custom_call.1} parent=0
    _
  %s8 = ssub.s32 1, %s6
  %s9 = scalar_select 0, %s8, %s6
  $region1: #{tpu_custom_call.1} parent=0
    #allocation4 [shape = 'u8[8192]{0}', space=vmem, size = 0x2000, scoped, tag = 'input window, operand 0, single buffered']
    #allocation5 [shape = 's32[1]{0}', space=sflag, size = 0x4, scoped, tag = 'scoped memory for tpu_custom_call.1']
    #allocation6 [shape = 's32[1]{0}', space=sflag, size = 0x4, scoped, tag = 'scoped memory for tpu_custom_call.1']
    #allocation7 [shape = 'u8[8192]{0}', space=vmem, size = 0x2000, scoped, tag = 'output window, operand 0, single buffered']
    %10 = vsyncpa [#allocation5], 0
    %11 = vsyncpa [#allocation6], 0
    // Predicated region
    $region2: #{tpu_custom_call.1} parent=1 // pred_check
      _
    $region3: #{tpu_custom_call.1} parent=1 // pred_check_branch
      %13 = sbr.rel (0) target = $region5
    $region4: #{tpu_custom_call.1} parent=1 // pred_region
      %s15 = ssub.s32 256, 256
      %16 = vsyncadd [#allocation5], %s15
      %s17 = sshll.u32 [#allocation4], 4
      %s18 = int_to_ptr.vmem [resolvable:$true] %s17
      %23 = dma.hbm_to_vmem [thread:$0]  %s0, 256, %s18, [#allocation5], 128, 128, 8
    $region5: #{tpu_custom_call.1} parent=1 // pred_fallthru
      _
    // Predicated region
    $region6: #{tpu_custom_call.1} parent=1 // pred_check
      _
    $region7: #{tpu_custom_call.1} parent=1 // pred_check_branch
      %25 = sbr.rel (0) target = $region9
    $region8: #{tpu_custom_call.1} parent=1 // pred_region
      _
    $region9: #{tpu_custom_call.1} parent=1 // pred_fallthru
      _
    // Predicated region
    $region10: #{tpu_custom_call.1} parent=1 // pred_check
      _
    $region11: #{tpu_custom_call.1} parent=1 // pred_check_branch
      %27 = sbr.rel (0) target = $region13
    $region12: #{tpu_custom_call.1} parent=1 // pred_region
      _
    $region13: #{tpu_custom_call.1} parent=1 // pred_fallthru
      _
    // Predicated region
    $region14: #{tpu_custom_call.1} parent=1 // pred_check
      _
    $region15: #{tpu_custom_call.1} parent=1 // pred_check_branch
      %29 = sbr.rel (0) target = $region17
    $region16: #{tpu_custom_call.1} parent=1 // pred_region
      _
    $region17: #{tpu_custom_call.1} parent=1 // pred_fallthru
      _
    // Predicated region
    $region18: #{tpu_custom_call.1} parent=1 // pred_check
      _
    $region19: #{tpu_custom_call.1} parent=1 // pred_check_branch
      %31 = sbr.rel (0) target = $region21
    $region20: #{tpu_custom_call.1} parent=1 // pred_region
      _
    $region21: #{tpu_custom_call.1} parent=1 // pred_fallthru
      _
    // Predicated region
    $region22: #{tpu_custom_call.1} parent=1 // pred_check
      _
    $region23: #{tpu_custom_call.1} parent=1 // pred_check_branch
      %33 = sbr.rel (0) target = $region25
    $region24: #{tpu_custom_call.1} parent=1 // pred_region
      %34 = dma.done [#allocation5], 256
    $region25: #{tpu_custom_call.1} parent=1 // pred_fallthru
      _
    %p35 = scmp.eq.s32.totalorder 0, 0
    // Predicated region
    $region26: #{tpu_custom_call.1} parent=1 // pred_check
      %p36 = pneg %p35
    $region27: #{tpu_custom_call.1} parent=1 // pred_check_branch
      %38 = sbr.rel (%p36) target = $region29
    $region28: #{tpu_custom_call.1} parent=1 // pred_region
      %vm39 = vcmask 261120
      %40 = vst.msk [vmem:[#allocation2] sm:$0xff] %vm39, 0.0
      %41 = vst.msk [vmem:[#allocation2 + $0x8] sm:$0xff] %vm39, 0.0
      %vm42 = vcmask 64512
      %43 = vst.msk [vmem:[#allocation3] sm:$0xff] %vm42, 0.0
      %44 = vst.msk [vmem:[#allocation3 + $0x8] sm:$0xff] %vm42, 0.0
    $region29: #{tpu_custom_call.1} parent=1 // pred_fallthru
      _
    %v45 = vld [vmem:[#allocation4] sm:$0xff]
    %v46 = vld [vmem:[#allocation4 + $0x8] sm:$0xff]
    %v47 = vld [vmem:[#allocation2] sm:$0xff]
    %v48 = vld [vmem:[#allocation2 + $0x8] sm:$0xff]
    %v49 = vld [vmem:[%s1] sm:$0xff]
    %v50 = vld [vmem:[%s1 + $0x8] sm:$0xff]
    %v51 = vld [vmem:[%s1 + $0x10] sm:$0xff]
    %v52 = vld [vmem:[%s1 + $0x18] sm:$0xff]
    %vm53 = vcmask 261120
    %v55 = vsel %vm53, %v45, 0
    %v58 = vsel %vm53, %v46, 0
    %60 = vmatprep.subr.mxu0 0.0
    %61 = vmatpush1.msra.mxu0 0.0
    %62 = vmatprep.subr.mxu0 0.0
    %63 = vmatpush1.msra.mxu0 0.0
    %64 = vmatprep.subr.mxu0 0.0
    %65 = vmatpush1.msra.mxu0 0.0
    %66 = vmatprep.subr.mxu0 0.0
    %67 = vmatpush1.msra.mxu0 0.0
    %68 = vmatprep.subr.mxu0 0.0
    %69 = vmatpush1.msra.mxu0 0.0
    %70 = vmatprep.subr.mxu0 0.0
    %71 = vmatpush1.msra.mxu0 0.0
    %72 = vmatprep.subr.mxu0 0.0
    %73 = vmatpush1.msra.mxu0 0.0
    %74 = vmatprep.subr.mxu0 0.0
    %75 = vmatpush1.msra.mxu0 0.0
    %76 = vmatprep.subr.mxu0 0.0
    %77 = vmatpush1.msra.mxu0 0.0
    %78 = vmatprep.subr.mxu0 0.0
    %79 = vmatpush1.msra.mxu0 0.0
    %80 = vmatprep.subr.mxu0 0.0
    %81 = vmatpush1.msra.mxu0 0.0
    %82 = vmatprep.subr.mxu0 0.0
    %83 = vmatpush1.msra.mxu0 0.0
    %84 = vmatprep.subr.mxu0 0.0
    %85 = vmatpush1.msra.mxu0 %v52
    %86 = vmatprep.subr.mxu0 0.0
    %87 = vmatpush1.msra.mxu0 %v51
    %88 = vmatprep.subr.mxu0 0.0
    %89 = vmatpush1.msra.mxu0 %v50
    %90 = vmatprep.subr.mxu0 0.0
    %91 = vmatpush1.msra.mxu0 %v49
    %92 = vmatprep.subr.mxu0 0.0
    %93 = vmatpush2.msra.mxu0 0.0
    %94 = vmatprep.subr.mxu0 0.0
    %95 = vmatpush2.msra.mxu0 0.0
    %96 = vmatprep.subr.mxu0 0.0
    %97 = vmatpush2.msra.mxu0 0.0
    %98 = vmatprep.subr.mxu0 0.0
    %99 = vmatpush2.msra.mxu0 0.0
    %100 = vmatprep.subr.mxu0 0.0
    %101 = vmatpush2.msra.mxu0 0.0
    %102 = vmatprep.subr.mxu0 0.0
    %103 = vmatpush2.msra.mxu0 0.0
    %104 = vmatprep.subr.mxu0 0.0
    %105 = vmatpush2.msra.mxu0 0.0
    %106 = vmatprep.subr.mxu0 0.0
    %107 = vmatpush2.msra.mxu0 0.0
    %108 = vmatprep.subr.mxu0 0.0
    %109 = vmatpush2.msra.mxu0 0.0
    %110 = vmatprep.subr.mxu0 0.0
    %111 = vmatpush2.msra.mxu0 0.0
    %112 = vmatprep.subr.mxu0 0.0
    %113 = vmatpush2.msra.mxu0 0.0
    %114 = vmatprep.subr.mxu0 0.0
    %115 = vmatpush2.msra.mxu0 0.0
    %116 = vmatprep.subr.mxu0 0.0
    %117 = vmatpush2.msra.mxu0 0.0
    %118 = vmatprep.subr.mxu0 0.0
    %119 = vmatpush2.msra.mxu0 0.0
    %120 = vmatprep.subr.mxu0 0.0
    %121 = vmatpush2.msra.mxu0 0.0
    %122 = vmatprep.subr.mxu0 0.0
    %123 = vmatpush2.msra.mxu0 0.0
    %124 = vmatprep.mubr.f32.mxu0 0.0
    %125 = vmatmul.mubr.f32.gmra.mxu0 %v55
    %v126 = vpop.f32.mrf.mxu0
    %v127 = vadd.f32 0.0, %v126
    %v128 = vpop.f32.mrf.mxu0
    %129 = vmatprep.mubr.f32.mxu0 0.0
    %130 = vmatmul.mubr.f32.gmra.mxu0 %v58
    %v131 = vpop.f32.mrf.mxu0
    %v132 = vadd.f32 0.0, %v131
    %v133 = vpop.f32.mrf.mxu0
    %134 = vdwg.mxu0
    %v135 = vadd.f32 %v47, %v127
    %v136 = vadd.f32 %v48, %v132
    %137 = vst.msk [vmem:[#allocation2] sm:$0xff] %vm53, %v135
    %138 = vst.msk [vmem:[#allocation2 + $0x8] sm:$0xff] %vm53, %v136
    %v139 = vld [vmem:[#allocation3] sm:$0xff]
    %v140 = vld [vmem:[#allocation3 + $0x8] sm:$0xff]
    %v141 = vld [vmem:[%s3] sm:$0xff]
    %v142 = vld [vmem:[%s3 + $0x8] sm:$0xff]
    %v143 = vld [vmem:[%s3 + $0x10] sm:$0xff]
    %v144 = vld [vmem:[%s3 + $0x18] sm:$0xff]
    %145 = vmatprep.subr.mxu0 0.0
    %146 = vmatpush1.msra.mxu0 0.0
    %147 = vmatprep.subr.mxu0 0.0
    %148 = vmatpush1.msra.mxu0 0.0
    %149 = vmatprep.subr.mxu0 0.0
    %150 = vmatpush1.msra.mxu0 0.0
    %151 = vmatprep.subr.mxu0 0.0
    %152 = vmatpush1.msra.mxu0 0.0
    %153 = vmatprep.subr.mxu0 0.0
    %154 = vmatpush1.msra.mxu0 0.0
    %155 = vmatprep.subr.mxu0 0.0
    %156 = vmatpush1.msra.mxu0 0.0
    %157 = vmatprep.subr.mxu0 0.0
    %158 = vmatpush1.msra.mxu0 0.0
    %159 = vmatprep.subr.mxu0 0.0
    %160 = vmatpush1.msra.mxu0 0.0
    %161 = vmatprep.subr.mxu0 0.0
    %162 = vmatpush1.msra.mxu0 0.0
    %163 = vmatprep.subr.mxu0 0.0
    %164 = vmatpush1.msra.mxu0 0.0
    %165 = vmatprep.subr.mxu0 0.0
    %166 = vmatpush1.msra.mxu0 0.0
    %167 = vmatprep.subr.mxu0 0.0
    %168 = vmatpush1.msra.mxu0 0.0
    %169 = vmatprep.subr.mxu0 0.0
    %170 = vmatpush1.msra.mxu0 %v144
    %171 = vmatprep.subr.mxu0 0.0
    %172 = vmatpush1.msra.mxu0 %v143
    %173 = vmatprep.subr.mxu0 0.0
    %174 = vmatpush1.msra.mxu0 %v142
    %175 = vmatprep.subr.mxu0 0.0
    %176 = vmatpush1.msra.mxu0 %v141
    %177 = vmatprep.subr.mxu0 0.0
    %178 = vmatpush2.msra.mxu0 0.0
    %179 = vmatprep.subr.mxu0 0.0
    %180 = vmatpush2.msra.mxu0 0.0
    %181 = vmatprep.subr.mxu0 0.0
    %182 = vmatpush2.msra.mxu0 0.0
    %183 = vmatprep.subr.mxu0 0.0
    %184 = vmatpush2.msra.mxu0 0.0
    %185 = vmatprep.subr.mxu0 0.0
    %186 = vmatpush2.msra.mxu0 0.0
    %187 = vmatprep.subr.mxu0 0.0
    %188 = vmatpush2.msra.mxu0 0.0
    %189 = vmatprep.subr.mxu0 0.0
    %190 = vmatpush2.msra.mxu0 0.0
    %191 = vmatprep.subr.mxu0 0.0
    %192 = vmatpush2.msra.mxu0 0.0
    %193 = vmatprep.subr.mxu0 0.0
    %194 = vmatpush2.msra.mxu0 0.0
    %195 = vmatprep.subr.mxu0 0.0
    %196 = vmatpush2.msra.mxu0 0.0
    %197 = vmatprep.subr.mxu0 0.0
    %198 = vmatpush2.msra.mxu0 0.0
    %199 = vmatprep.subr.mxu0 0.0
    %200 = vmatpush2.msra.mxu0 0.0
    %201 = vmatprep.subr.mxu0 0.0
    %202 = vmatpush2.msra.mxu0 0.0
    %203 = vmatprep.subr.mxu0 0.0
    %204 = vmatpush2.msra.mxu0 0.0
    %205 = vmatprep.subr.mxu0 0.0
    %206 = vmatpush2.msra.mxu0 0.0
    %207 = vmatprep.subr.mxu0 0.0
    %208 = vmatpush2.msra.mxu0 0.0
    %209 = vmatprep.mubr.f32.mxu0 0.0
    %210 = vmatmul.mubr.f32.gmra.mxu0 %v55
    %v211 = vpop.f32.mrf.mxu0
    %v212 = vadd.f32 0.0, %v211
    %v213 = vpop.f32.mrf.mxu0
    %214 = vmatprep.mubr.f32.mxu0 0.0
    %215 = vmatmul.mubr.f32.gmra.mxu0 %v58
    %v216 = vpop.f32.mrf.mxu0
    %v217 = vadd.f32 0.0, %v216
    %v218 = vpop.f32.mrf.mxu0
    %219 = vdwg.mxu0
    %v220 = vadd.f32 %v139, %v212
    %v221 = vadd.f32 %v140, %v217
    %vm222 = vcmask 64512
    %223 = vst.msk [vmem:[#allocation3] sm:$0xff] %vm222, %v220
    %224 = vst.msk [vmem:[#allocation3 + $0x8] sm:$0xff] %vm222, %v221
    // Predicated region
    $region30: #{tpu_custom_call.1} parent=1 // pred_check
      %p225 = pneg %p35
    $region31: #{tpu_custom_call.1} parent=1 // pred_check_branch
      %227 = sbr.rel (%p225) target = $region33
    $region32: #{tpu_custom_call.1} parent=1 // pred_region
      %v228 = vld [vmem:[#allocation3] sm:$0xff]
      %v229 = vld [vmem:[#allocation3 + $0x8] sm:$0xff]
      %v230 = vmul.f32 %v228, 4.0
      %v231 = vmul.f32 %v229, 4.0
      %v232 = vld [vmem:[%s4] sm:$0xff]
      %v234 = vsel %vm222, %v230, 0
      %v237 = vsel %vm222, %v231, 0
      %239 = vmatprep.subr.mxu0 0.0
      %240 = vmatpush1.msra.mxu0 0.0
      %241 = vmatprep.subr.mxu0 0.0
      %242 = vmatpush1.msra.mxu0 0.0
      %243 = vmatprep.subr.mxu0 0.0
      %244 = vmatpush1.msra.mxu0 0.0
      %245 = vmatprep.subr.mxu0 0.0
      %246 = vmatpush1.msra.mxu0 0.0
      %247 = vmatprep.subr.mxu0 0.0
      %248 = vmatpush1.msra.mxu0 0.0
      %249 = vmatprep.subr.mxu0 0.0
      %250 = vmatpush1.msra.mxu0 0.0
      %251 = vmatprep.subr.mxu0 0.0
      %252 = vmatpush1.msra.mxu0 0.0
      %253 = vmatprep.subr.mxu0 0.0
      %254 = vmatpush1.msra.mxu0 0.0
      %255 = vmatprep.subr.mxu0 0.0
      %256 = vmatpush1.msra.mxu0 0.0
      %257 = vmatprep.subr.mxu0 0.0
      %258 = vmatpush1.msra.mxu0 0.0
      %259 = vmatprep.subr.mxu0 0.0
      %260 = vmatpush1.msra.mxu0 0.0
      %261 = vmatprep.subr.mxu0 0.0
      %262 = vmatpush1.msra.mxu0 0.0
      %263 = vmatprep.subr.mxu0 0.0
      %264 = vmatpush1.msra.mxu0 0.0
      %265 = vmatprep.subr.mxu0 0.0
      %266 = vmatpush1.msra.mxu0 0.0
      %267 = vmatprep.subr.mxu0 0.0
      %268 = vmatpush1.msra.mxu0 0.0
      %269 = vmatprep.subr.mxu0 0.0
      %270 = vmatpush1.msra.mxu0 %v232
      %271 = vmatprep.subr.mxu0 0.0
      %272 = vmatpush2.msra.mxu0 0.0
      %273 = vmatprep.subr.mxu0 0.0
      %274 = vmatpush2.msra.mxu0 0.0
      %275 = vmatprep.subr.mxu0 0.0
      %276 = vmatpush2.msra.mxu0 0.0
      %277 = vmatprep.subr.mxu0 0.0
      %278 = vmatpush2.msra.mxu0 0.0
      %279 = vmatprep.subr.mxu0 0.0
      %280 = vmatpush2.msra.mxu0 0.0
      %281 = vmatprep.subr.mxu0 0.0
      %282 = vmatpush2.msra.mxu0 0.0
      %283 = vmatprep.subr.mxu0 0.0
      %284 = vmatpush2.msra.mxu0 0.0
      %285 = vmatprep.subr.mxu0 0.0
      %286 = vmatpush2.msra.mxu0 0.0
      %287 = vmatprep.subr.mxu0 0.0
      %288 = vmatpush2.msra.mxu0 0.0
      %289 = vmatprep.subr.mxu0 0.0
      %290 = vmatpush2.msra.mxu0 0.0
      %291 = vmatprep.subr.mxu0 0.0
      %292 = vmatpush2.msra.mxu0 0.0
      %293 = vmatprep.subr.mxu0 0.0
      %294 = vmatpush2.msra.mxu0 0.0
      %295 = vmatprep.subr.mxu0 0.0
      %296 = vmatpush2.msra.mxu0 0.0
      %297 = vmatprep.subr.mxu0 0.0
      %298 = vmatpush2.msra.mxu0 0.0
      %299 = vmatprep.subr.mxu0 0.0
      %300 = vmatpush2.msra.mxu0 0.0
      %301 = vmatprep.subr.mxu0 0.0
      %302 = vmatpush2.msra.mxu0 0.0
      %303 = vmatprep.mubr.f32.mxu0 0.0
      %304 = vmatmul.mubr.f32.gmra.mxu0 %v234
      %v305 = vpop.f32.mrf.mxu0
      %v306 = vadd.f32 0.0, %v305
      %v307 = vpop.f32.mrf.mxu0
      %308 = vmatprep.mubr.f32.mxu0 0.0
      %309 = vmatmul.mubr.f32.gmra.mxu0 %v237
      %v310 = vpop.f32.mrf.mxu0
      %v311 = vadd.f32 0.0, %v310
      %v312 = vpop.f32.mrf.mxu0
      %313 = vdwg.mxu0
      %v314 = vld [vmem:[#allocation2] sm:$0xff]
      %v315 = vld [vmem:[#allocation2 + $0x8] sm:$0xff]
      %v316 = vld [vmem:[%s2] sm:$0x1]
      %v318 = vlaneseq
      %v319 = vshrl.u32 %v318, 7
      %v320 = vsub.s32 0, %v319
      %v321 = vrot.slane %v316, %v320
      %v323 = vadd.f32 %v314, %v321
      %v324 = vadd.f32 %v315, %v321
      %v325 = vadd.f32 %v323, %v306
      %v326 = vadd.f32 %v324, %v311
      %327 = vst.msk [vmem:[#allocation7] sm:$0xff] %vm53, %v325
      %328 = vst.msk [vmem:[#allocation7 + $0x8] sm:$0xff] %vm53, %v326
    $region33: #{tpu_custom_call.1} parent=1 // pred_fallthru
      _
    // Predicated region
    $region34: #{tpu_custom_call.1} parent=1 // pred_check
      _
    $region35: #{tpu_custom_call.1} parent=1 // pred_check_branch
      %330 = sbr.rel (0) target = $region37
    $region36: #{tpu_custom_call.1} parent=1 // pred_region
      %s332 = ssub.s32 256, 256
      %333 = vsyncadd [#allocation6], %s332
      %s334 = sshll.u32 [#allocation7], 4
      %s335 = int_to_ptr.vmem [resolvable:$true] %s334
      %340 = dma.vmem_to_hbm [thread:$0]  %s335, 256, %s5, [#allocation6], 128, 128, 8
    $region37: #{tpu_custom_call.1} parent=1 // pred_fallthru
      _
    // Predicated region
    $region38: #{tpu_custom_call.1} parent=1 // pred_check
      _
    $region39: #{tpu_custom_call.1} parent=1 // pred_check_branch
      %342 = sbr.rel (0) target = $region41
    $region40: #{tpu_custom_call.1} parent=1 // pred_region
      %343 = dma.done [#allocation6], 256
    $region41: #{tpu_custom_call.1} parent=1 // pred_fallthru
      _
    %344 = vsyncpa [#allocation5], 1
    %345 = vsyncpa [#allocation6], 1

</llo_original>
